<compile_context>
chip_gen: v7x
topology: tpu7x:2x2x1
jax: 0.10.0
libtpu: 0.0.40
codegen_flags: <defaults>
</compile_context>

<pallas_src>
import functools

import jax
import jax.numpy as jnp
from jax.experimental import pallas as pl
from jax.experimental.pallas import tpu as pltpu


def _round_up(x, m):
    return ((int(x) + m - 1) // m) * m


def _discrete_embed_kernel(codes_ref, table_ref, out_ref, *, dim, v_pad):
    """One grid step: embed a (TN) token tile into an E tile.

    codes_ref : (TN, dim)            int32   VMEM
    table_ref : (dim*V_pad, TILE_E)  float32 VMEM  (all tables stacked on K)
    out_ref   : (TN, TILE_E)         float32 VMEM  (lane-dense, TILE_E % 128 == 0)
    """
    tn = out_ref.shape[0]
    codes = codes_ref[...]                                            # (TN, dim)
    # Single iota, reused for every j (JAX does not CSE broadcast_in_dim).
    iota_v = jax.lax.broadcasted_iota(jnp.int32, (tn, v_pad), 1)      # (TN, V_pad)
    # Fused one-hot over K = dim*V_pad: block j of the lanes is the one-hot of
    # codes[:, j].  2-D (TN, 1) slices keep TN on sublanes (no XLU transpose).
    blocks = [
        (codes[:, j:j + 1] == iota_v).astype(jnp.float32) for j in range(dim)
    ]
    onehot = jnp.concatenate(blocks, axis=1)                          # (TN, dim*V_pad)
    # One MXU contraction: gather + sum over the `dim` tables in a single dot.
    out_ref[...] = jnp.dot(
        onehot, table_ref[...], preferred_element_type=jnp.float32
    ).astype(out_ref.dtype)


def pack_embedding_tables(tables, *, tile_e=256):
    """Hoisted (call once): stack + pad the per-slot embedding tables.

    tables : list of (vocab_j, n_embd) float arrays
    returns (packed, meta) where packed is (dim*V_pad, E_pad) float32.
    """
    dim = len(tables)
    n_embd = int(tables[0].shape[-1])

    v_pad = max(128, _round_up(max(int(t.shape[0]) for t in tables), 128))

    # E tile: multiple of 128 (lane-dense stores; also keeps the MXU RHS wide
    # on v6e/v7x).  E_pad is a multiple of the tile so the grid divides evenly.
    te = max(128, (int(tile_e) // 128) * 128)
    te = min(te, _round_up(n_embd, 128))
    e_pad = _round_up(n_embd, te)

    packed = jnp.concatenate(
        [
            jnp.pad(
                jnp.asarray(t, jnp.float32),
                ((0, v_pad - t.shape[0]), (0, e_pad - t.shape[1])),
            )
            for t in tables
        ],
        axis=0,
    )  # (dim*V_pad, E_pad)

    meta = dict(dim=dim, n_embd=n_embd, v_pad=v_pad, e_pad=e_pad, tile_e=te)
    return packed, meta


def discrete_embedding_pallas(tk_codes, packed_tables, meta, *, tile_tokens=1024):
    """Forward pass: (..., dim) integer codes -> (..., n_embd) float32."""
    dim = meta["dim"]
    n_embd = meta["n_embd"]
    v_pad = meta["v_pad"]
    e_pad = meta["e_pad"]
    te = meta["tile_e"]

    assert tk_codes.shape[-1] == dim
    lead_shape = tk_codes.shape[:-1]
    codes = tk_codes.reshape(-1, dim).astype(jnp.int32)               # (N, dim)
    n_tokens = codes.shape[0]

    # Token tile: as large as requested, rounded DOWN to a multiple of 8
    # (sublane constraint), and no larger than the (8-rounded) token count.
    tn = min(int(tile_tokens), _round_up(n_tokens, 8))
    tn = max(8, (tn // 8) * 8)
    n_pad = _round_up(n_tokens, tn)
    if n_pad != n_tokens:
        codes = jnp.pad(codes, ((0, n_pad - n_tokens), (0, 0)))

    grid = (n_pad // tn, e_pad // te)
    k_dim = dim * v_pad

    kernel = functools.partial(_discrete_embed_kernel, dim=dim, v_pad=v_pad)

    cost = pl.CostEstimate(
        flops=2 * n_pad * k_dim * e_pad,
        transcendentals=0,
        bytes_accessed=codes.size * 4 + packed_tables.size * 4 + n_pad * e_pad * 4,
    )

    out_p = pl.pallas_call(
        kernel,
        out_shape=jax.ShapeDtypeStruct((n_pad, e_pad), jnp.float32),
        grid_spec=pltpu.PrefetchScalarGridSpec(
            num_scalar_prefetch=0,
            grid=grid,
            in_specs=[
                # codes tile: constant in the E axis -> not re-DMAed per E step.
                pl.BlockSpec((tn, dim), lambda i, e: (i, 0)),
                # table slab: constant in the token axis -> DMAed only when the
                # E tile changes; E tiling bounds its VMEM footprint (v7x).
                pl.BlockSpec((k_dim, te), lambda i, e: (0, e)),
            ],
            out_specs=pl.BlockSpec((tn, te), lambda i, e: (i, e)),
        ),
        compiler_params=pltpu.CompilerParams(
            # Both axes independent -> megacore-shardable (2 TCs on v7x).
            dimension_semantics=("parallel", "parallel"),
            # Explicit budget (<= v7x physical 64 MiB); tiles above fit easily.
            vmem_limit_bytes=64 * 1024 * 1024,
        ),
        cost_estimate=cost,
    )(codes, packed_tables)

    # Skip the extra HBM slice copy when already aligned.
    out = out_p
    if n_pad != n_tokens or e_pad != n_embd:
        out = out_p[:n_tokens, :n_embd]
    return out.reshape(*lead_shape, n_embd)


if __name__ == "__main__":
    # Module config (synthetic, deterministic init like nn.Embedding ~ N(0,1)).
    n_embd = 32
    token_dim = 2
    dict_sizes = [7, 5]
    batch, seq = 2, 8

    key = jax.random.PRNGKey(0)
    k_tab0, k_tab1, k_codes = jax.random.split(key, 3)
    tables = [
        jax.random.normal(k_tab0, (dict_sizes[0], n_embd), jnp.float32),
        jax.random.normal(k_tab1, (dict_sizes[1], n_embd), jnp.float32),
    ]
    # tk_codes: (batch, seq, token_dim) integer codes within each dict size
    c0 = jax.random.randint(k_codes, (batch, seq, 1), 0, dict_sizes[0])
    c1 = jax.random.randint(jax.random.fold_in(k_codes, 1),
                            (batch, seq, 1), 0, dict_sizes[1])
    tk_codes = jnp.concatenate([c0, c1], axis=-1)  # (2, 8, 2)

    # Pack the tables ONCE (hoisted out of the per-call forward path).
    packed, meta = pack_embedding_tables(tables)

    out = discrete_embedding_pallas(tk_codes, packed, meta)
    out = jax.block_until_ready(out)

    # Pure-JAX reference: sum of embedding lookups.
    ref = tables[0][tk_codes[..., 0]] + tables[1][tk_codes[..., 1]]
    assert out.shape == (batch, seq, n_embd), out.shape
    assert jnp.allclose(out, ref, atol=1e-5, rtol=1e-5), "mismatch vs reference"

    print("KERNEL_OK")
</pallas_src>

<mosaic_0001>
module attributes {stable_mosaic.version = 11 : i64} {
  func.func @_discrete_embed_kernel(%arg0: i32, %arg1: i32, %arg2: memref<16x2xi32, #tpu.memory_space<vmem>>, %arg3: memref<256x128xf32, #tpu.memory_space<vmem>>, %arg4: memref<16x128xf32, #tpu.memory_space<vmem>>) attributes {dimension_semantics = [#tpu.dimension_semantics<parallel>, #tpu.dimension_semantics<parallel>], iteration_bounds = array<i64: 1, 1>, scalar_prefetch = 0 : i64, scratch_operands = 0 : i64, tpu.core_type = #tpu.core_type<tc>, window_params = [{transform_indices = @transform_0, window_bounds = array<i64: 16, 2>}, {transform_indices = @transform_1, window_bounds = array<i64: 256, 128>}, {transform_indices = @transform_2, window_bounds = array<i64: 16, 128>}]} {
    %c0 = arith.constant 0 : index
    %c0_0 = arith.constant 0 : index
    %0 = vector.load %arg2[%c0, %c0_0] : memref<16x2xi32, #tpu.memory_space<vmem>>, vector<16x2xi32>
    %1 = tpu.iota {dimensions = array<i32: 1>} : vector<16x128xi32>
    %2 = vector.extract_strided_slice %0 {offsets = [0, 0], sizes = [16, 1], strides = [1, 1]} : vector<16x2xi32> to vector<16x1xi32>
    %3 = vector.broadcast %2 : vector<16x1xi32> to vector<16x128xi32>
    %4 = arith.cmpi eq, %3, %1 : vector<16x128xi32>
    %5 = arith.extui %4 : vector<16x128xi1> to vector<16x128xi32>
    %6 = arith.sitofp %5 : vector<16x128xi32> to vector<16x128xf32>
    %7 = vector.extract_strided_slice %0 {offsets = [0, 1], sizes = [16, 1], strides = [1, 1]} : vector<16x2xi32> to vector<16x1xi32>
    %8 = vector.broadcast %7 : vector<16x1xi32> to vector<16x128xi32>
    %9 = arith.cmpi eq, %8, %1 : vector<16x128xi32>
    %10 = arith.extui %9 : vector<16x128xi1> to vector<16x128xi32>
    %11 = arith.sitofp %10 : vector<16x128xi32> to vector<16x128xf32>
    %12 = tpu.concatenate %6, %11 in 1 : vector<16x128xf32>, vector<16x128xf32> -> vector<16x256xf32>
    %c0_1 = arith.constant 0 : index
    %c0_2 = arith.constant 0 : index
    %13 = vector.load %arg3[%c0_1, %c0_2] : memref<256x128xf32, #tpu.memory_space<vmem>>, vector<256x128xf32>
    %cst = arith.constant dense<0.000000e+00> : vector<16x128xf32>
    %14 = tpu.matmul %12, %13, %cst {dimension_numbers = #tpu.dot_dimension_numbers<[1], [0], [0], [1], [0, 0, 1, 1], [], []>} : vector<16x256xf32>, vector<256x128xf32>, vector<16x128xf32> -> vector<16x128xf32>
    %c0_3 = arith.constant 0 : index
    %c0_4 = arith.constant 0 : index
    %15 = vector.load %arg4[%c0_3, %c0_4] : memref<16x128xf32, #tpu.memory_space<vmem>>, vector<16x128xf32>
    tpu.vector_store %arg4[%c0_3, %c0_4], %14 {strides = array<i32>} : memref<16x128xf32, #tpu.memory_space<vmem>>, vector<16x128xf32>,
    return
  }
  func.func @transform_0(%arg0: i32, %arg1: i32) -> (i32, i32) {
    %c0_i32 = arith.constant 0 : i32
    %c0_i32_0 = arith.constant 0 : i32
    return %arg0, %c0_i32 : i32, i32
  }
  func.func @transform_1(%arg0: i32, %arg1: i32) -> (i32, i32) {
    %c0_i32 = arith.constant 0 : i32
    %c0_i32_0 = arith.constant 0 : i32
    return %c0_i32, %arg1 : i32, i32
  }
  func.func @transform_2(%arg0: i32, %arg1: i32) -> (i32, i32) {
    %c0_i32 = arith.constant 0 : i32
    return %arg0, %arg1 : i32, i32
  }
}

</mosaic_0001>

<llo_original>
// kernel: tpu_custom_call.1
$region0: #{tpu_custom_call.1}
  #allocation0 [shape = 'u32[]', space=smem, size = 0x4, offset = 0x4, fixed_abs, tag = 'smem constant byte address 0x4 - core index']
  #allocation1 [shape = 'u32[144,128]{1,0:T(1,128)}', space=vmem, size = 0x12000, scoped, tag = 'internal scratch']
  %s0 = inlined_call_operand.hbm [shape: s32[16,2], index: 0, kind: input, shape index: {}]
  %s1 = inlined_call_operand.hbm [shape: f32[256,128], index: 1, kind: input, shape index: {}]
  %s2 = inlined_call_operand.hbm [shape: f32[16,128], index: 2, kind: output, shape index: {}]
  %s3 = sld [smem:[#allocation0]]
  $region26: #{tpu_custom_call.1} parent=0
    _
  %s5 = ssub.s32 1, %s3
  %s6 = scalar_select 0, %s5, %s3
  $region1: #{tpu_custom_call.1} parent=0
    #allocation2 [shape = 'u8[8192]{0}', space=vmem, size = 0x2000, scoped, tag = 'input window, operand 0, single buffered']
    #allocation3 [shape = 's32[1]{0}', space=sflag, size = 0x4, scoped, tag = 'scoped memory for tpu_custom_call.1']
    #allocation4 [shape = 's32[1]{0}', space=sflag, size = 0x4, scoped, tag = 'scoped memory for tpu_custom_call.1']
    #allocation5 [shape = 'u8[131072]{0}', space=vmem, size = 0x20000, scoped, tag = 'input window, operand 1, single buffered']
    #allocation6 [shape = 's32[1]{0}', space=sflag, size = 0x4, scoped, tag = 'scoped memory for tpu_custom_call.1']
    #allocation7 [shape = 'u8[8192]{0}', space=vmem, size = 0x2000, scoped, tag = 'output window, operand 0, single buffered']
    %7 = vsyncpa [#allocation3], 0
    %8 = vsyncpa [#allocation6], 0
    %9 = vsyncpa [#allocation4], 0
    // Predicated region
    $region2: #{tpu_custom_call.1} parent=1 // pred_check
      _
    $region3: #{tpu_custom_call.1} parent=1 // pred_check_branch
      %11 = sbr.rel (0) target = $region5
    $region4: #{tpu_custom_call.1} parent=1 // pred_region
      %s13 = ssub.s32 256, 256
      %14 = vsyncadd [#allocation3], %s13
      %s15 = sshll.u32 [#allocation2], 4
      %s16 = int_to_ptr.vmem [resolvable:$true] %s15
      %21 = dma.hbm_to_vmem [thread:$0]  %s0, 256, %s16, [#allocation3], 128, 128, 8
    $region5: #{tpu_custom_call.1} parent=1 // pred_fallthru
      _
    // Predicated region
    $region6: #{tpu_custom_call.1} parent=1 // pred_check
      _
    $region7: #{tpu_custom_call.1} parent=1 // pred_check_branch
      %23 = sbr.rel (0) target = $region9
    $region8: #{tpu_custom_call.1} parent=1 // pred_region
      %s25 = ssub.s32 4096, 4096
      %26 = vsyncadd [#allocation6], %s25
      %s27 = sshll.u32 [#allocation5], 4
      %s28 = int_to_ptr.vmem [resolvable:$true] %s27
      %33 = dma.hbm_to_vmem [thread:$0]  %s1, 4096, %s28, [#allocation6], 128, 128, 8
    $region9: #{tpu_custom_call.1} parent=1 // pred_fallthru
      _
    // Predicated region
    $region10: #{tpu_custom_call.1} parent=1 // pred_check
      _
    $region11: #{tpu_custom_call.1} parent=1 // pred_check_branch
      %35 = sbr.rel (0) target = $region13
    $region12: #{tpu_custom_call.1} parent=1 // pred_region
      %36 = dma.done [#allocation3], 256
    $region13: #{tpu_custom_call.1} parent=1 // pred_fallthru
      _
    // Predicated region
    $region14: #{tpu_custom_call.1} parent=1 // pred_check
      _
    $region15: #{tpu_custom_call.1} parent=1 // pred_check_branch
      %38 = sbr.rel (0) target = $region17
    $region16: #{tpu_custom_call.1} parent=1 // pred_region
      %39 = dma.done [#allocation6], 4096
    $region17: #{tpu_custom_call.1} parent=1 // pred_fallthru
      _
    %v40 = vld [vmem:[#allocation2] sm:$0xff]
    %v41 = vld [vmem:[#allocation2 + $0x8] sm:$0xff]
    %v42 = vlaneseq
    %v43 = vand.u32 %v42, 127
    %44 = vset.pattern.permute.xlu0 0
    %45 = vperm.xlu0 %44, %v40
    %v46 = vpop.permute.xlu0 %45
    %47 = vset.pattern.permute.xlu0 0
    %48 = vperm.xlu0 %47, %v41
    %v49 = vpop.permute.xlu0 %48
    %vm50 = vcmp.eq.s32.totalorder %v46, %v43
    %vm51 = vcmp.eq.s32.totalorder %v49, %v43
    %v52 = vsel %vm50, 1, 0
    %v53 = vsel %vm51, 1, 0
    %v54 = vcvt.s32.f32 %v52
    %v55 = vcvt.s32.f32 %v53
    %56 = vset.pattern.permute.xlu0 1
    %57 = vperm.xlu0 %56, %v40
    %v58 = vpop.permute.xlu0 %57
    %59 = vset.pattern.permute.xlu0 1
    %60 = vperm.xlu0 %59, %v41
    %v61 = vpop.permute.xlu0 %60
    %vm62 = vcmp.eq.s32.totalorder %v58, %v43
    %vm63 = vcmp.eq.s32.totalorder %v61, %v43
    %v64 = vsel %vm62, 1, 0
    %v65 = vsel %vm63, 1, 0
    %v66 = vcvt.s32.f32 %v64
    %v67 = vcvt.s32.f32 %v65
    %v68 = vld [vmem:[#allocation5] sm:$0xff]
    %v69 = vld [vmem:[#allocation5 + $0x8] sm:$0xff]
    %v70 = vld [vmem:[#allocation5 + $0x10] sm:$0xff]
    %v71 = vld [vmem:[#allocation5 + $0x18] sm:$0xff]
    %v72 = vld [vmem:[#allocation5 + $0x20] sm:$0xff]
    %v73 = vld [vmem:[#allocation5 + $0x28] sm:$0xff]
    %v74 = vld [vmem:[#allocation5 + $0x30] sm:$0xff]
    %v75 = vld [vmem:[#allocation5 + $0x38] sm:$0xff]
    %v76 = vld [vmem:[#allocation5 + $0x40] sm:$0xff]
    %v77 = vld [vmem:[#allocation5 + $0x48] sm:$0xff]
    %v78 = vld [vmem:[#allocation5 + $0x50] sm:$0xff]
    %v79 = vld [vmem:[#allocation5 + $0x58] sm:$0xff]
    %v80 = vld [vmem:[#allocation5 + $0x60] sm:$0xff]
    %v81 = vld [vmem:[#allocation5 + $0x68] sm:$0xff]
    %v82 = vld [vmem:[#allocation5 + $0x70] sm:$0xff]
    %v83 = vld [vmem:[#allocation5 + $0x78] sm:$0xff]
    %v84 = vld [vmem:[#allocation5 + $0x80] sm:$0xff]
    %v85 = vld [vmem:[#allocation5 + $0x88] sm:$0xff]
    %v86 = vld [vmem:[#allocation5 + $0x90] sm:$0xff]
    %v87 = vld [vmem:[#allocation5 + $0x98] sm:$0xff]
    %v88 = vld [vmem:[#allocation5 + $0xa0] sm:$0xff]
    %v89 = vld [vmem:[#allocation5 + $0xa8] sm:$0xff]
    %v90 = vld [vmem:[#allocation5 + $0xb0] sm:$0xff]
    %v91 = vld [vmem:[#allocation5 + $0xb8] sm:$0xff]
    %v92 = vld [vmem:[#allocation5 + $0xc0] sm:$0xff]
    %v93 = vld [vmem:[#allocation5 + $0xc8] sm:$0xff]
    %v94 = vld [vmem:[#allocation5 + $0xd0] sm:$0xff]
    %v95 = vld [vmem:[#allocation5 + $0xd8] sm:$0xff]
    %v96 = vld [vmem:[#allocation5 + $0xe0] sm:$0xff]
    %v97 = vld [vmem:[#allocation5 + $0xe8] sm:$0xff]
    %v98 = vld [vmem:[#allocation5 + $0xf0] sm:$0xff]
    %v99 = vld [vmem:[#allocation5 + $0xf8] sm:$0xff]
    %100 = vmatprep.subr.mxu0 0.0
    %101 = vmatpush1.msra.mxu0 %v68
    %102 = vmatprep.subr.mxu0 0.0
    %103 = vmatpush1.msra.mxu0 %v69
    %104 = vmatprep.subr.mxu0 0.0
    %105 = vmatpush1.msra.mxu0 %v70
    %106 = vmatprep.subr.mxu0 0.0
    %107 = vmatpush1.msra.mxu0 %v71
    %108 = vmatprep.subr.mxu0 0.0
    %109 = vmatpush1.msra.mxu0 %v72
    %110 = vmatprep.subr.mxu0 0.0
    %111 = vmatpush1.msra.mxu0 %v73
    %112 = vmatprep.subr.mxu0 0.0
    %113 = vmatpush1.msra.mxu0 %v74
    %114 = vmatprep.subr.mxu0 0.0
    %115 = vmatpush1.msra.mxu0 %v75
    %116 = vmatprep.subr.mxu0 0.0
    %117 = vmatpush1.msra.mxu0 %v76
    %118 = vmatprep.subr.mxu0 0.0
    %119 = vmatpush1.msra.mxu0 %v77
    %120 = vmatprep.subr.mxu0 0.0
    %121 = vmatpush1.msra.mxu0 %v78
    %122 = vmatprep.subr.mxu0 0.0
    %123 = vmatpush1.msra.mxu0 %v79
    %124 = vmatprep.subr.mxu0 0.0
    %125 = vmatpush1.msra.mxu0 %v80
    %126 = vmatprep.subr.mxu0 0.0
    %127 = vmatpush1.msra.mxu0 %v81
    %128 = vmatprep.subr.mxu0 0.0
    %129 = vmatpush1.msra.mxu0 %v82
    %130 = vmatprep.subr.mxu0 0.0
    %131 = vmatpush1.msra.mxu0 %v83
    %132 = vmatprep.subr.mxu0 0.0
    %133 = vmatpush1.msra.mxu0 %v84
    %134 = vmatprep.subr.mxu0 0.0
    %135 = vmatpush1.msra.mxu0 %v85
    %136 = vmatprep.subr.mxu0 0.0
    %137 = vmatpush1.msra.mxu0 %v86
    %138 = vmatprep.subr.mxu0 0.0
    %139 = vmatpush1.msra.mxu0 %v87
    %140 = vmatprep.subr.mxu0 0.0
    %141 = vmatpush1.msra.mxu0 %v88
    %142 = vmatprep.subr.mxu0 0.0
    %143 = vmatpush1.msra.mxu0 %v89
    %144 = vmatprep.subr.mxu0 0.0
    %145 = vmatpush1.msra.mxu0 %v90
    %146 = vmatprep.subr.mxu0 0.0
    %147 = vmatpush1.msra.mxu0 %v91
    %148 = vmatprep.subr.mxu0 0.0
    %149 = vmatpush1.msra.mxu0 %v92
    %150 = vmatprep.subr.mxu0 0.0
    %151 = vmatpush1.msra.mxu0 %v93
    %152 = vmatprep.subr.mxu0 0.0
    %153 = vmatpush1.msra.mxu0 %v94
    %154 = vmatprep.subr.mxu0 0.0
    %155 = vmatpush1.msra.mxu0 %v95
    %156 = vmatprep.subr.mxu0 0.0
    %157 = vmatpush1.msra.mxu0 %v96
    %158 = vmatprep.subr.mxu0 0.0
    %159 = vmatpush1.msra.mxu0 %v97
    %160 = vmatprep.subr.mxu0 0.0
    %161 = vmatpush1.msra.mxu0 %v98
    %162 = vmatprep.subr.mxu0 0.0
    %163 = vmatpush1.msra.mxu0 %v99
    %164 = vmatprep.mubr.f32.mxu0 %v66
    %165 = vmatmul.mubr.f32.gmra.mrb[0].mxu0 %v54
    %v166 = vpop.f32.mrb[0].mxu0
    %v167 = vadd.f32 0.0, %v166
    %v168 = vpop.f32.mrb[0].mxu0
    %169 = vmatprep.mubr.f32.mxu0 %v67
    %170 = vmatmul.mubr.f32.gmra.mrb[0].mxu0 %v55
    %v171 = vpop.f32.mrb[0].mxu0
    %v172 = vadd.f32 0.0, %v171
    %v173 = vpop.f32.mrb[0].mxu0
    %174 = vdwg.mxu0
    %175 = vst [vmem:[#allocation7] sm:$0xff] %v167
    %176 = vst [vmem:[#allocation7 + $0x8] sm:$0xff] %v172
    // Predicated region
    $region18: #{tpu_custom_call.1} parent=1 // pred_check
      _
    $region19: #{tpu_custom_call.1} parent=1 // pred_check_branch
      %178 = sbr.rel (0) target = $region21
    $region20: #{tpu_custom_call.1} parent=1 // pred_region
      %s180 = ssub.s32 256, 256
      %181 = vsyncadd [#allocation4], %s180
      %s182 = sshll.u32 [#allocation7], 4
      %s183 = int_to_ptr.vmem [resolvable:$true] %s182
      %188 = dma.vmem_to_hbm [thread:$0]  %s183, 256, %s2, [#allocation4], 128, 128, 8
    $region21: #{tpu_custom_call.1} parent=1 // pred_fallthru
      _
    // Predicated region
    $region22: #{tpu_custom_call.1} parent=1 // pred_check
      _
    $region23: #{tpu_custom_call.1} parent=1 // pred_check_branch
      %190 = sbr.rel (0) target = $region25
    $region24: #{tpu_custom_call.1} parent=1 // pred_region
      %191 = dma.done [#allocation4], 256
    $region25: #{tpu_custom_call.1} parent=1 // pred_fallthru
      _
    %192 = vsyncpa [#allocation3], 1
    %193 = vsyncpa [#allocation6], 1
    %194 = vsyncpa [#allocation4], 1

</llo_original>
